<compile_context>
chip_gen: v5e
topology: v5e:2x2
jax: 0.10.0
libtpu: 0.0.40
codegen_flags: <defaults>
</compile_context>

<pallas_src>
import jax
import jax.numpy as jnp
from jax import lax
from jax.experimental import pallas as pl
from jax.experimental.pallas import tpu as pltpu


def _fused_linear_kernel(x_ref, wt_ref, bt_ref, o_ref):
    # x_ref : (TB, 16)  streamed batch tile
    # wt_ref: (2, 16)   fused weight, stored (N, K) -- VMEM-resident
    # bt_ref: (2, 1)    fused bias -- VMEM-resident
    # o_ref : (2, TB)   transposed output tile, batch on the lane axis
    #
    # yT = Wt @ x.T expressed as an A @ B^T contraction (same MXU pattern as q @ k.T),
    # so no explicit in-kernel transpose is materialized and the store is lane-dense.
    yt = lax.dot_general(
        wt_ref[...], x_ref[...],
        dimension_numbers=(((1,), (1,)), ((), ())),
        preferred_element_type=jnp.float32,
    )
    o_ref[...] = (yt + bt_ref[...]).astype(o_ref.dtype)


def sample_net_forward(x, w1, b1, w2, b2, *, tb=8192):
    """x: (B, 16) f32. w1: (16, 8), b1: (8,), w2: (8, 2), b2: (2,). Returns (B, 2)."""
    B, K = x.shape

    # Algebraic fusion of the two affine layers (valid only with no nonlinearity).
    wt = (w1 @ w2).T                       # (2, 16)  fused weight, (N, K)
    bt = (b1 @ w2 + b2).reshape(-1, 1)     # (2, 1)   fused bias
    N = wt.shape[0]

    # Batch tile: multiple of 128 (lane-dense output), capped so tiny batches don't
    # over-pad.  8192 x 16 f32 = 512 KiB per double-buffered input slot.
    tb = min(tb, pl.cdiv(B, 128) * 128)
    b_pad = pl.cdiv(B, tb) * tb
    if b_pad != B:
        x = jnp.pad(x, ((0, b_pad - B), (0, 0)))

    cost = pl.CostEstimate(
        flops=2 * b_pad * K * N,
        transcendentals=0,
        bytes_accessed=b_pad * (K + N) * x.dtype.itemsize + (N * K + N) * 4,
    )

    out_t = pl.pallas_call(
        _fused_linear_kernel,
        out_shape=jax.ShapeDtypeStruct((N, b_pad), x.dtype),
        grid_spec=pl.GridSpec(
            grid=(b_pad // tb,),
            in_specs=[
                pl.BlockSpec((tb, K), lambda i: (i, 0)),   # x: streams along batch
                pl.BlockSpec((N, K), lambda i: (0, 0)),    # fused weight: resident
                pl.BlockSpec((N, 1), lambda i: (0, 0)),    # fused bias: resident
            ],
            out_specs=pl.BlockSpec((N, tb), lambda i: (0, i)),   # lane-dense output
        ),
        compiler_params=pltpu.CompilerParams(
            dimension_semantics=("parallel",),
        ),
        cost_estimate=cost,
    )(x, wt, bt)

    return out_t[:, :B].T                  # back to (B, 2)


def init_params(key):
    """Deterministic init mimicking nn.Linear's uniform(-1/sqrt(fan_in), 1/sqrt(fan_in))."""
    k1, k2, k3, k4 = jax.random.split(key, 4)
    bound1 = 1.0 / jnp.sqrt(16.0)
    bound2 = 1.0 / jnp.sqrt(8.0)
    # Stored as (in, out) so the math is x @ W (PyTorch stores (out, in)).
    w1 = jax.random.uniform(k1, (16, 8), jnp.float32, -bound1, bound1)
    b1 = jax.random.uniform(k2, (8,), jnp.float32, -bound1, bound1)
    w2 = jax.random.uniform(k3, (8, 2), jnp.float32, -bound2, bound2)
    b2 = jax.random.uniform(k4, (2,), jnp.float32, -bound2, bound2)
    return w1, b1, w2, b2


if __name__ == "__main__":
    key = jax.random.PRNGKey(0)
    kx, kp = jax.random.split(key)

    B = 8  # small smoke-test batch
    x = jax.random.normal(kx, (B, 16), jnp.float32)
    w1, b1, w2, b2 = init_params(kp)

    out = sample_net_forward(x, w1, b1, w2, b2)
    out = jax.block_until_ready(out)

    # Reference: the unfused two-layer forward (same semantics as the PyTorch module).
    ref = (x @ w1 + b1) @ w2 + b2
    assert out.shape == (B, 2)
    assert jnp.allclose(out, ref, atol=1e-5, rtol=1e-5)

    print("KERNEL_OK")
</pallas_src>

<mosaic_0001>
module attributes {stable_mosaic.version = 11 : i64} {
  func.func @_fused_linear_kernel(%arg0: i32, %arg1: memref<128x16xf32, #tpu.memory_space<vmem>>, %arg2: memref<2x16xf32, #tpu.memory_space<vmem>>, %arg3: memref<2x1xf32, #tpu.memory_space<vmem>>, %arg4: memref<2x128xf32, #tpu.memory_space<vmem>>) attributes {dimension_semantics = [#tpu.dimension_semantics<parallel>], iteration_bounds = array<i64: 1>, scalar_prefetch = 0 : i64, scratch_operands = 0 : i64, tpu.core_type = #tpu.core_type<tc>, window_params = [{transform_indices = @transform_0, window_bounds = array<i64: 128, 16>}, {pipeline_mode = #tpu.pipeline_mode<synchronous>, transform_indices = @transform_1, window_bounds = array<i64: 2, 16>}, {pipeline_mode = #tpu.pipeline_mode<synchronous>, transform_indices = @transform_2, window_bounds = array<i64: 2, 1>}, {transform_indices = @transform_3, window_bounds = array<i64: 2, 128>}]} {
    %c0 = arith.constant 0 : index
    %c0_0 = arith.constant 0 : index
    %0 = vector.load %arg2[%c0, %c0_0] : memref<2x16xf32, #tpu.memory_space<vmem>>, vector<2x16xf32>
    %c0_1 = arith.constant 0 : index
    %c0_2 = arith.constant 0 : index
    %1 = vector.load %arg1[%c0_1, %c0_2] : memref<128x16xf32, #tpu.memory_space<vmem>>, vector<128x16xf32>
    %cst = arith.constant dense<0.000000e+00> : vector<2x128xf32>
    %2 = tpu.matmul %0, %1, %cst {dimension_numbers = #tpu.dot_dimension_numbers<[1], [1], [0], [0], [0, 0, 1, 0], [], []>} : vector<2x16xf32>, vector<128x16xf32>, vector<2x128xf32> -> vector<2x128xf32>
    %c0_3 = arith.constant 0 : index
    %c0_4 = arith.constant 0 : index
    %3 = vector.load %arg3[%c0_3, %c0_4] : memref<2x1xf32, #tpu.memory_space<vmem>>, vector<2x1xf32>
    %4 = vector.broadcast %3 : vector<2x1xf32> to vector<2x128xf32>
    %5 = arith.addf %2, %4 : vector<2x128xf32>
    %c0_5 = arith.constant 0 : index
    %c0_6 = arith.constant 0 : index
    %6 = vector.load %arg4[%c0_5, %c0_6] : memref<2x128xf32, #tpu.memory_space<vmem>>, vector<2x128xf32>
    tpu.vector_store %arg4[%c0_5, %c0_6], %5 {strides = array<i32>} : memref<2x128xf32, #tpu.memory_space<vmem>>, vector<2x128xf32>,
    return
  }
  func.func @transform_0(%arg0: i32) -> (i32, i32) {
    %c0_i32 = arith.constant 0 : i32
    %c0_i32_0 = arith.constant 0 : i32
    return %arg0, %c0_i32 : i32, i32
  }
  func.func @transform_1(%arg0: i32) -> (i32, i32) {
    %c0_i32 = arith.constant 0 : i32
    %c0_i32_0 = arith.constant 0 : i32
    %c0_i32_1 = arith.constant 0 : i32
    return %c0_i32, %c0_i32_0 : i32, i32
  }
  func.func @transform_2(%arg0: i32) -> (i32, i32) {
    %c0_i32 = arith.constant 0 : i32
    %c0_i32_0 = arith.constant 0 : i32
    %c0_i32_1 = arith.constant 0 : i32
    return %c0_i32, %c0_i32_0 : i32, i32
  }
  func.func @transform_3(%arg0: i32) -> (i32, i32) {
    %c0_i32 = arith.constant 0 : i32
    %c0_i32_0 = arith.constant 0 : i32
    return %c0_i32, %arg0 : i32, i32
  }
}

</mosaic_0001>

<llo_original>
// kernel: tpu_custom_call.1
$region0: #{tpu_custom_call.1}
  #allocation0 [shape = 'u32[]', space=smem, size = 0x4, offset = 0x4, fixed_abs, tag = 'smem constant byte address 0x4 - core index']
  #allocation1 [shape = 'u32[72,128]{1,0:T(1,128)}', space=vmem, size = 0x9000, scoped, tag = 'internal scratch']
  %s0 = inlined_call_operand.vmem [shape: f32[128,16], index: 0, kind: input, shape index: {}]
  %s1 = inlined_call_operand.vmem [shape: f32[2,16], index: 1, kind: input, shape index: {}]
  %s2 = inlined_call_operand.vmem [shape: f32[2,1], index: 2, kind: input, shape index: {}]
  %s3 = inlined_call_operand.hbm [shape: f32[2,128], index: 3, kind: output, shape index: {}]
  %s4 = sld [smem:[#allocation0]]
  $region22: #{tpu_custom_call.1} parent=0
    _
  %s6 = ssub.s32 1, %s4
  %s7 = scalar_select 0, %s6, %s4
  $region1: #{tpu_custom_call.1} parent=0
    #allocation2 [shape = 'u8[1024]{0}', space=vmem, size = 0x400, scoped, tag = 'output window, operand 0, single buffered']
    #allocation3 [shape = 's32[1]{0}', space=sflag, size = 0x4, scoped, tag = 'scoped memory for tpu_custom_call.1']
    %8 = vsyncpa [#allocation3], 0
    // Predicated region
    $region2: #{tpu_custom_call.1} parent=1 // pred_check
      _
    $region3: #{tpu_custom_call.1} parent=1 // pred_check_branch
      %10 = sbr.rel (0) target = $region5
    $region4: #{tpu_custom_call.1} parent=1 // pred_region
      _
    $region5: #{tpu_custom_call.1} parent=1 // pred_fallthru
      _
    // Predicated region
    $region6: #{tpu_custom_call.1} parent=1 // pred_check
      _
    $region7: #{tpu_custom_call.1} parent=1 // pred_check_branch
      %12 = sbr.rel (0) target = $region9
    $region8: #{tpu_custom_call.1} parent=1 // pred_region
      _
    $region9: #{tpu_custom_call.1} parent=1 // pred_fallthru
      _
    // Predicated region
    $region10: #{tpu_custom_call.1} parent=1 // pred_check
      _
    $region11: #{tpu_custom_call.1} parent=1 // pred_check_branch
      %14 = sbr.rel (0) target = $region13
    $region12: #{tpu_custom_call.1} parent=1 // pred_region
      _
    $region13: #{tpu_custom_call.1} parent=1 // pred_fallthru
      _
    %v15 = vld [vmem:[%s1] sm:$0x3]
    %v16 = vld [vmem:[%s0] sm:$0xff]
    %v17 = vld [vmem:[%s0 + $0x8] sm:$0xff]
    %v18 = vld [vmem:[%s0 + $0x10] sm:$0xff]
    %v19 = vld [vmem:[%s0 + $0x18] sm:$0xff]
    %v20 = vld [vmem:[%s0 + $0x20] sm:$0xff]
    %v21 = vld [vmem:[%s0 + $0x28] sm:$0xff]
    %v22 = vld [vmem:[%s0 + $0x30] sm:$0xff]
    %v23 = vld [vmem:[%s0 + $0x38] sm:$0xff]
    %v24 = vld [vmem:[%s0 + $0x40] sm:$0xff]
    %v25 = vld [vmem:[%s0 + $0x48] sm:$0xff]
    %v26 = vld [vmem:[%s0 + $0x50] sm:$0xff]
    %v27 = vld [vmem:[%s0 + $0x58] sm:$0xff]
    %v28 = vld [vmem:[%s0 + $0x60] sm:$0xff]
    %v29 = vld [vmem:[%s0 + $0x68] sm:$0xff]
    %v30 = vld [vmem:[%s0 + $0x70] sm:$0xff]
    %v31 = vld [vmem:[%s0 + $0x78] sm:$0xff]
    %v32 = vld [vmem:[%s2] sm:$0x3]
    %34 = vset.pattern.permute.xlu0 0
    %35 = vperm.xlu0 %34, %v32
    %v36 = vpop.permute.xlu0 %35
    %vm38 = vcmask 130048
    %v40 = vsel %vm38, %v15, 0
    %v43 = vsel %vm38, %v16, 0
    %v46 = vsel %vm38, %v17, 0
    %v49 = vsel %vm38, %v18, 0
    %v52 = vsel %vm38, %v19, 0
    %v55 = vsel %vm38, %v20, 0
    %v58 = vsel %vm38, %v21, 0
    %v61 = vsel %vm38, %v22, 0
    %v64 = vsel %vm38, %v23, 0
    %v67 = vsel %vm38, %v24, 0
    %v70 = vsel %vm38, %v25, 0
    %v73 = vsel %vm38, %v26, 0
    %v76 = vsel %vm38, %v27, 0
    %v79 = vsel %vm38, %v28, 0
    %v82 = vsel %vm38, %v29, 0
    %v85 = vsel %vm38, %v30, 0
    %v88 = vsel %vm38, %v31, 0
    %90 = vmatpush.xpose.msra.mxu0 %v88
    %91 = vmatpush.xpose.msra.mxu0 %v85
    %92 = vmatpush.xpose.msra.mxu0 %v82
    %93 = vmatpush.xpose.msra.mxu0 %v79
    %94 = vmatpush.xpose.msra.mxu0 %v76
    %95 = vmatpush.xpose.msra.mxu0 %v73
    %96 = vmatpush.xpose.msra.mxu0 %v70
    %97 = vmatpush.xpose.msra.mxu0 %v67
    %98 = vmatpush.xpose.msra.mxu0 %v64
    %99 = vmatpush.xpose.msra.mxu0 %v61
    %100 = vmatpush.xpose.msra.mxu0 %v58
    %101 = vmatpush.xpose.msra.mxu0 %v55
    %102 = vmatpush.xpose.msra.mxu0 %v52
    %103 = vmatpush.xpose.msra.mxu0 %v49
    %104 = vmatpush.xpose.msra.mxu0 %v46
    %105 = vmatpush.xpose.msra.mxu0 %v43
    %106 = vmatmul.f32.gmra.mxu0 %v40
    %v107 = vpop.f32.mrf.mxu0
    %v108 = vadd.f32 %v36, %v107
    %109 = vdwg.mxu0
    %110 = vst [vmem:[#allocation2] sm:$0x3] %v108
    // Predicated region
    $region14: #{tpu_custom_call.1} parent=1 // pred_check
      _
    $region15: #{tpu_custom_call.1} parent=1 // pred_check_branch
      %112 = sbr.rel (0) target = $region17
    $region16: #{tpu_custom_call.1} parent=1 // pred_region
      %114 = vsyncadd [#allocation3], 0
      %s116 = sshll.u32 [#allocation2], 4
      %s117 = int_to_ptr.vmem [resolvable:$true] %s116
      %s118 = sshll.u32 %s3, 4
      %s119 = int_to_ptr.hbm [resolvable:$true] %s118
      %121 = dma.vmem_to_hbm [thread:$0]  %s117, 32, %s119, [#allocation3]
    $region17: #{tpu_custom_call.1} parent=1 // pred_fallthru
      _
    // Predicated region
    $region18: #{tpu_custom_call.1} parent=1 // pred_check
      _
    $region19: #{tpu_custom_call.1} parent=1 // pred_check_branch
      %123 = sbr.rel (0) target = $region21
    $region20: #{tpu_custom_call.1} parent=1 // pred_region
      %125 = dma.done [#allocation3], 32
    $region21: #{tpu_custom_call.1} parent=1 // pred_fallthru
      _
    %126 = vsyncpa [#allocation3], 1

</llo_original>
